<compile_context>
chip_gen: v7x
topology: tpu7x:2x2x1
jax: 0.10.0
libtpu: 0.0.40
codegen_flags: <defaults>
</compile_context>

<pallas_src>
import jax
import jax.numpy as jnp
from jax.experimental import pallas as pl
from jax.experimental.pallas import tpu as pltpu


def _round_up(x, m):
    return ((x + m - 1) // m) * m


def mean_pool_linear_kernel(x_ref, w_ref, b_ref, o_ref, acc_ref):
    # x_ref: (TN, TT, F)  w_ref: (F, n_out_p) f32 (1/T folded in)
    # b_ref: (1, n_out_p) f32                 o_ref: (TN, n_out_p)
    # acc_ref: (TN, F) f32 scratch, persistent across the T grid axis.
    t = pl.program_id(1)

    @pl.when(t == 0)
    def _init():
        acc_ref[...] = jnp.zeros_like(acc_ref)

    # Partial sum over the T (sublane) chunk; F stays lane-dense.
    acc_ref[...] += jnp.sum(x_ref[...].astype(jnp.float32), axis=1)

    @pl.when(t == pl.num_programs(1) - 1)
    def _finalize():
        # acc holds raw sums; the 1/T mean scale is folded into w_ref.
        out = jnp.dot(acc_ref[...], w_ref[...],
                      preferred_element_type=jnp.float32) + b_ref[...]
        o_ref[...] = out.astype(o_ref.dtype)


def _pick_tiles(N, T, F, itemsize=4, tn=None, tt=None):
    TN = tn if tn is not None else 8
    if tt is not None:
        TT = _round_up(tt, 8)
    else:
        # Keep each x buffer <= ~4 MiB so the double-buffered footprint stays
        # comfortably inside v7x's scoped VMEM; amortizes per-step overhead.
        budget = 4 * 1024 * 1024
        tt_max = max(8, (budget // max(1, TN * F * itemsize)) // 8 * 8)
        TT = max(8, min(_round_up(T, 8), tt_max, 1024))
    return TN, TT


def mean_pooling_forward(x, weight, bias, *, tn=None, tt=None):
    """x: (N, F, T, 1); weight: (n_out, n_in) PyTorch layout; bias: (n_out,)."""
    N, F, T, one = x.shape
    assert one == 1
    n_out, n_in = weight.shape
    assert n_in == F

    # Layout glue: squeeze singleton, put F on lanes, T on sublanes.
    x3 = jnp.transpose(x[..., 0], (0, 2, 1))            # (N, T, F)

    TN, TT = _pick_tiles(N, T, F, jnp.dtype(x.dtype).itemsize, tn, tt)
    Np = _round_up(N, TN)
    Tp = _round_up(T, TT)
    n_out_p = _round_up(n_out, 128)                      # lane-dense output

    # Zero-pad: padded T rows contribute 0 to the sum; padded N rows sliced off.
    x3 = jnp.pad(x3, ((0, Np - N), (0, Tp - T), (0, 0)))

    # Fold the 1/T mean scale into the pre-transposed weight; pad n_out to 128.
    w_t = (weight.astype(jnp.float32).T / T)             # (F, n_out)
    w_t = jnp.pad(w_t, ((0, 0), (0, n_out_p - n_out)))
    b2 = jnp.pad(bias.astype(jnp.float32),
                 (0, n_out_p - n_out)).reshape(1, n_out_p)

    grid = (Np // TN, Tp // TT)

    out = pl.pallas_call(
        mean_pool_linear_kernel,
        out_shape=jax.ShapeDtypeStruct((Np, n_out_p), x.dtype),
        grid=grid,
        in_specs=[
            pl.BlockSpec((TN, TT, F), lambda n, t: (n, t, 0)),
            pl.BlockSpec((F, n_out_p), lambda n, t: (0, 0)),
            pl.BlockSpec((1, n_out_p), lambda n, t: (0, 0)),
        ],
        out_specs=pl.BlockSpec((TN, n_out_p), lambda n, t: (n, 0)),
        scratch_shapes=[pltpu.VMEM((TN, F), jnp.float32)],
        compiler_params=pltpu.CompilerParams(
            dimension_semantics=("parallel", "arbitrary"),
            vmem_limit_bytes=32 * 1024 * 1024,
        ),
    )(x3, w_t, b2)

    return out[:N, :n_out]


if __name__ == "__main__":
    # Small shapes consistent with forward(): (samples_num, freq_bins, time_steps, 1).
    # T=60 / TT=16 exercises multi-step T accumulation plus zero-padding of the
    # last T chunk; N=4 exercises batch-row padding up to TN=8.
    N, n_in, T, n_out = 4, 64, 60, 16

    key = jax.random.PRNGKey(0)
    kx, kw, kb = jax.random.split(key, 3)

    x = jax.random.normal(kx, (N, n_in, T, 1), dtype=jnp.float32)
    # Linear(n_in, n_out): weight (n_out, n_in), bias (n_out,)
    weight = jax.random.normal(kw, (n_out, n_in), dtype=jnp.float32) * 0.02
    bias = jax.random.normal(kb, (n_out,), dtype=jnp.float32) * 0.02

    out = mean_pooling_forward(x, weight, bias, tt=16)
    out = jax.block_until_ready(out)

    # Pure-JAX reference for correctness.
    ref = jnp.mean(x, axis=(2, 3)) @ weight.T + bias
    assert out.shape == (N, n_out)
    assert jnp.allclose(out, ref, atol=1e-4, rtol=1e-4), \
        float(jnp.max(jnp.abs(out - ref)))

    print("KERNEL_OK")
</pallas_src>

<mosaic_0001>
module attributes {stable_mosaic.version = 11 : i64} {
  func.func @mean_pool_linear_kernel(%arg0: i32, %arg1: i32, %arg2: memref<8x16x64xf32, #tpu.memory_space<vmem>>, %arg3: memref<64x128xf32, #tpu.memory_space<vmem>>, %arg4: memref<1x128xf32, #tpu.memory_space<vmem>>, %arg5: memref<8x128xf32, #tpu.memory_space<vmem>>, %arg6: memref<8x64xf32, #tpu.memory_space<vmem>>) attributes {dimension_semantics = [#tpu.dimension_semantics<parallel>, #tpu.dimension_semantics<arbitrary>], iteration_bounds = array<i64: 1, 4>, scalar_prefetch = 0 : i64, scratch_operands = 1 : i64, tpu.core_type = #tpu.core_type<tc>, window_params = [{transform_indices = @transform_0, window_bounds = array<i64: 8, 16, 64>}, {pipeline_mode = #tpu.pipeline_mode<synchronous>, transform_indices = @transform_1, window_bounds = array<i64: 64, 128>}, {pipeline_mode = #tpu.pipeline_mode<synchronous>, transform_indices = @transform_2, window_bounds = array<i64: 1, 128>}, {transform_indices = @transform_3, window_bounds = array<i64: 8, 128>}]} {
    %c0_i32 = arith.constant 0 : i32
    %0 = arith.cmpi eq, %arg1, %c0_i32 : i32
    %1 = arith.extui %0 : i1 to i32
    %c0_i32_0 = arith.constant 0 : i32
    %2 = arith.cmpi ne, %1, %c0_i32_0 : i32
    scf.if %2 {
      %cst_8 = arith.constant 0.000000e+00 : f32
      %11 = vector.broadcast %cst_8 : f32 to vector<8x64xf32>
      %c0_9 = arith.constant 0 : index
      %c0_10 = arith.constant 0 : index
      %12 = vector.load %arg6[%c0_9, %c0_10] : memref<8x64xf32, #tpu.memory_space<vmem>>, vector<8x64xf32>
      tpu.vector_store %arg6[%c0_9, %c0_10], %11 {strides = array<i32>} : memref<8x64xf32, #tpu.memory_space<vmem>>, vector<8x64xf32>,
    } else {
    }
    %c0 = arith.constant 0 : index
    %c0_1 = arith.constant 0 : index
    %3 = vector.load %arg6[%c0, %c0_1] : memref<8x64xf32, #tpu.memory_space<vmem>>, vector<8x64xf32>
    %c0_2 = arith.constant 0 : index
    %c0_3 = arith.constant 0 : index
    %c0_4 = arith.constant 0 : index
    %4 = vector.load %arg2[%c0_2, %c0_3, %c0_4] : memref<8x16x64xf32, #tpu.memory_space<vmem>>, vector<8x16x64xf32>
    %cst = arith.constant dense<0.000000e+00> : vector<8x64xf32>
    %5 = vector.multi_reduction <add>, %4, %cst [1] : vector<8x16x64xf32> to vector<8x64xf32>
    %6 = arith.addf %3, %5 : vector<8x64xf32>
    %c0_5 = arith.constant 0 : index
    %c0_6 = arith.constant 0 : index
    %7 = vector.load %arg6[%c0_5, %c0_6] : memref<8x64xf32, #tpu.memory_space<vmem>>, vector<8x64xf32>
    tpu.vector_store %arg6[%c0_5, %c0_6], %6 {strides = array<i32>} : memref<8x64xf32, #tpu.memory_space<vmem>>, vector<8x64xf32>,
    %c3_i32 = arith.constant 3 : i32
    %8 = arith.cmpi eq, %arg1, %c3_i32 : i32
    %9 = arith.extui %8 : i1 to i32
    %c0_i32_7 = arith.constant 0 : i32
    %10 = arith.cmpi ne, %9, %c0_i32_7 : i32
    scf.if %10 {
      %c0_8 = arith.constant 0 : index
      %c0_9 = arith.constant 0 : index
      %11 = vector.load %arg6[%c0_8, %c0_9] : memref<8x64xf32, #tpu.memory_space<vmem>>, vector<8x64xf32>
      %c0_10 = arith.constant 0 : index
      %c0_11 = arith.constant 0 : index
      %12 = vector.load %arg3[%c0_10, %c0_11] : memref<64x128xf32, #tpu.memory_space<vmem>>, vector<64x128xf32>
      %cst_12 = arith.constant dense<0.000000e+00> : vector<8x128xf32>
      %13 = tpu.matmul %11, %12, %cst_12 {dimension_numbers = #tpu.dot_dimension_numbers<[1], [0], [0], [1], [0, 0, 1, 1], [], []>} : vector<8x64xf32>, vector<64x128xf32>, vector<8x128xf32> -> vector<8x128xf32>
      %c0_13 = arith.constant 0 : index
      %c0_14 = arith.constant 0 : index
      %14 = vector.load %arg4[%c0_13, %c0_14] : memref<1x128xf32, #tpu.memory_space<vmem>>, vector<1x128xf32>
      %15 = vector.broadcast %14 : vector<1x128xf32> to vector<8x128xf32>
      %16 = arith.addf %13, %15 : vector<8x128xf32>
      %c0_15 = arith.constant 0 : index
      %c0_16 = arith.constant 0 : index
      %17 = vector.load %arg5[%c0_15, %c0_16] : memref<8x128xf32, #tpu.memory_space<vmem>>, vector<8x128xf32>
      tpu.vector_store %arg5[%c0_15, %c0_16], %16 {strides = array<i32>} : memref<8x128xf32, #tpu.memory_space<vmem>>, vector<8x128xf32>,
    } else {
    }
    return
  }
  func.func @transform_0(%arg0: i32, %arg1: i32) -> (i32, i32, i32) {
    %c0_i32 = arith.constant 0 : i32
    %c0_i32_0 = arith.constant 0 : i32
    return %arg0, %arg1, %c0_i32 : i32, i32, i32
  }
  func.func @transform_1(%arg0: i32, %arg1: i32) -> (i32, i32) {
    %c0_i32 = arith.constant 0 : i32
    %c0_i32_0 = arith.constant 0 : i32
    %c0_i32_1 = arith.constant 0 : i32
    return %c0_i32, %c0_i32_0 : i32, i32
  }
  func.func @transform_2(%arg0: i32, %arg1: i32) -> (i32, i32) {
    %c0_i32 = arith.constant 0 : i32
    %c0_i32_0 = arith.constant 0 : i32
    %c0_i32_1 = arith.constant 0 : i32
    return %c0_i32, %c0_i32_0 : i32, i32
  }
  func.func @transform_3(%arg0: i32, %arg1: i32) -> (i32, i32) {
    %c0_i32 = arith.constant 0 : i32
    %c0_i32_0 = arith.constant 0 : i32
    return %arg0, %c0_i32 : i32, i32
  }
}

</mosaic_0001>

<llo_original>
// kernel: tpu_custom_call.1
$region0: #{tpu_custom_call.1}
  #allocation0 [shape = 'u32[]', space=smem, size = 0x4, offset = 0x4, fixed_abs, tag = 'smem constant byte address 0x4 - core index']
  #allocation1 [shape = 'u32[144,128]{1,0:T(1,128)}', space=vmem, size = 0x12000, scoped, tag = 'internal scratch']
  #allocation2 [shape = 'f32[8,64]{1,0:T(8,128)}', space=vmem, size = 0x1000, scoped, tag = 'scratch operand']
  #allocation9 [shape = 's32[]', space=sflag, size = 0x4, offset = 0, fixed_abs, tag = 'sflag constant byte address 0x0 - dummy sync flag']
  %s0 = inlined_call_operand.hbm [shape: f32[8,64,64], index: 0, kind: input, shape index: {}]
  %s1 = inlined_call_operand.hbm [shape: f32[64,128], index: 1, kind: input, shape index: {}]
  %s2 = inlined_call_operand.vmem [shape: f32[1,128], index: 2, kind: input, shape index: {}]
  %s3 = inlined_call_operand.hbm [shape: f32[8,128], index: 3, kind: output, shape index: {}]
  %s4 = sld [smem:[#allocation0]]
  $region61: #{tpu_custom_call.1} parent=0
    _
  %s6 = ssub.s32 1, %s4
  %s7 = scalar_select 0, %s6, %s4
  $region1: #{tpu_custom_call.1} parent=0
    #allocation3 [shape = 'u8[131072]{0}', space=vmem, size = 0x20000, scoped, tag = 'input window, operand 0']
    #allocation4 [shape = 's32[2]{0}', space=sflag, size = 0x8, scoped, tag = 'scoped memory for tpu_custom_call.1']
    #allocation5 [shape = 's32[2]{0}', space=sflag, size = 0x8, scoped, tag = 'scoped memory for tpu_custom_call.1']
    #allocation6 [shape = 'u8[32768]{0}', space=vmem, size = 0x8000, scoped, tag = 'input window, operand 1, single buffered']
    #allocation7 [shape = 's32[1]{0}', space=sflag, size = 0x4, scoped, tag = 'scoped memory for tpu_custom_call.1']
    #allocation8 [shape = 'u8[4096]{0}', space=vmem, size = 0x1000, scoped, tag = 'output window, operand 0, single buffered']
    %8 = vsyncpa [#allocation4], 0
    %s9 = scalar_lea.sflag [#allocation4], 1
    %10 = vsyncpa %s9, 0
    %11 = vsyncpa [#allocation7], 0
    %12 = vsyncpa [#allocation5], 0
    loop: start=0, step=1, limit=6
    $region2: #{tpu_custom_call.1} parent=1 // loop_pre_header
      _
    $region3: #{tpu_custom_call.1} parent=1 // loop_header
      %s14 = sphi 0, %s18
      %p15 = scmp.ge.s32.totalorder %s14, 6
      %s21 = sphi 0, %s33
      %s22 = sphi 0, %s29
      %s23 = sphi 0, %s21
      %s24 = sphi 0, %s22
      %s25 = sphi 0, %s23
      %s26 = sphi 0, %s24
      %s38 = sphi 0, %s40
      %s41 = sphi 0, %s38
      %s42 = sphi 0, %s41
      %s58 = sphi 0, %s42
      %s62 = sphi 0, %s62
      %s64 = sphi 0, %s62
      %s65 = sphi 0, %s64
      %s79 = sphi 0, %s65
      %s83 = sphi 0, %s83
      %s85 = sphi 0, %s83
      %s86 = sphi 0, %s85
      %s100 = sphi 0, %s86
      %s106 = sphi 0, %s108
      %s109 = sphi 0, %s106
      %s110 = sphi 0, %s109
      %s126 = sphi 0, %s110
    $region4: #{tpu_custom_call.1} parent=1 // loop_header_branch
      %17 = sbr.rel (%p15) target = $region8
    $region5: #{tpu_custom_call.1} parent=1 // loop_body
      %s19 = ssub.s32 %s14, 1
      %s20 = ssub.s32 %s14, 2
      %s27 = sadd.s32 1, %s22
      %p28 = scmp.ge.s32.totalorder %s27, 4
      %s29 = scalar_select %p28, 0, %s27
      %s30 = sadd.s32 1, %s21
      %s31 = scalar_select %p28, %s30, %s21
      %p32 = scmp.ge.s32.totalorder %s31, 1
      %s33 = scalar_select %p32, 0, %s31
      %s34 = ssub.s32 %s21, %s33
      %s35 = ssub.s32 %s22, %s29
      %s36 = sor.u32 %s34, %s35
      %p37 = scmp.eq.s32.totalorder %s36, 0
      %s39 = sadd.s32 %s38, 1
      %s40 = scalar_select %p37, %s38, %s39
      %p43 = pneg %p37
      %p44 = scmp.eq.s32.totalorder %s14, 3
      %p45 = por %p43, %p44
      %p46 = scmp.ne.s32.totalorder %s38, %s41
      %p47 = scmp.eq.s32.totalorder %s14, 0
      %p48 = por %p46, %p47
      %p49 = scmp.ne.s32.totalorder %s38, %s41
      %p50 = scmp.eq.s32.totalorder %s19, 3
      %p51 = por %p49, %p50
      %p52 = scmp.ne.s32.totalorder %s41, %s42
      %p53 = scmp.eq.s32.totalorder %s19, 0
      %p54 = por %p52, %p53
      %p55 = scmp.ne.s32.totalorder %s41, %s42
      %p56 = scmp.eq.s32.totalorder %s20, 3
      %p57 = por %p55, %p56
      %p59 = scmp.ne.s32.totalorder %s42, %s58
      %p60 = scmp.eq.s32.totalorder %s20, 0
      %p61 = por %p59, %p60
      %s63 = sadd.s32 %s62, 1
      %p66 = scmp.eq.s32.totalorder %s14, 3
      %p67 = scmp.ne.s32.totalorder %s62, %s64
      %p68 = scmp.eq.s32.totalorder %s14, 0
      %p69 = por %p67, %p68
      %p70 = scmp.ne.s32.totalorder %s62, %s64
      %p71 = scmp.eq.s32.totalorder %s19, 3
      %p72 = por %p70, %p71
      %p73 = scmp.ne.s32.totalorder %s64, %s65
      %p74 = scmp.eq.s32.totalorder %s19, 0
      %p75 = por %p73, %p74
      %p76 = scmp.ne.s32.totalorder %s64, %s65
      %p77 = scmp.eq.s32.totalorder %s20, 3
      %p78 = por %p76, %p77
      %p80 = scmp.ne.s32.totalorder %s65, %s79
      %p81 = scmp.eq.s32.totalorder %s20, 0
      %p82 = por %p80, %p81
      %s84 = sadd.s32 %s83, 1
      %p87 = scmp.eq.s32.totalorder %s14, 3
      %p88 = scmp.ne.s32.totalorder %s83, %s85
      %p89 = scmp.eq.s32.totalorder %s14, 0
      %p90 = por %p88, %p89
      %p91 = scmp.ne.s32.totalorder %s83, %s85
      %p92 = scmp.eq.s32.totalorder %s19, 3
      %p93 = por %p91, %p92
      %p94 = scmp.ne.s32.totalorder %s85, %s86
      %p95 = scmp.eq.s32.totalorder %s19, 0
      %p96 = por %p94, %p95
      %p97 = scmp.ne.s32.totalorder %s85, %s86
      %p98 = scmp.eq.s32.totalorder %s20, 3
      %p99 = por %p97, %p98
      %p101 = scmp.ne.s32.totalorder %s86, %s100
      %p102 = scmp.eq.s32.totalorder %s20, 0
      %p103 = por %p101, %p102
      %s104 = ssub.s32 %s21, %s33
      %p105 = scmp.eq.s32.totalorder %s104, 0
      %s107 = sadd.s32 %s106, 1
      %s108 = scalar_select %p105, %s106, %s107
      %p111 = pneg %p105
      %p112 = scmp.eq.s32.totalorder %s14, 3
      %p113 = por %p111, %p112
      %p114 = scmp.ne.s32.totalorder %s106, %s109
      %p115 = scmp.eq.s32.totalorder %s14, 0
      %p116 = por %p114, %p115
      %p117 = scmp.ne.s32.totalorder %s106, %s109
      %p118 = scmp.eq.s32.totalorder %s19, 3
      %p119 = por %p117, %p118
      %p120 = scmp.ne.s32.totalorder %s109, %s110
      %p121 = scmp.eq.s32.totalorder %s19, 0
      %p122 = por %p120, %p121
      %p123 = scmp.ne.s32.totalorder %s109, %s110
      %p124 = scmp.eq.s32.totalorder %s20, 3
      %p125 = por %p123, %p124
      %p127 = scmp.ne.s32.totalorder %s110, %s126
      %p128 = scmp.eq.s32.totalorder %s20, 0
      %p129 = por %p127, %p128
      %p130 = scmp.le.s32.totalorder 1, %s14
      %p131 = scmp.lt.s32.totalorder %s14, 5
      %p132 = pnand %p130, %p131
      %p133 = pneg %p132
      // Predicated region
      $region9: #{tpu_custom_call.1} parent=5 // pred_check
        _
      $region10: #{tpu_custom_call.1} parent=5 // pred_check_branch
        %135 = sbr.rel (%p132) target = $region12
      $region11: #{tpu_custom_call.1} parent=5 // pred_region
        %s136 = ssub.s32 %s14, 1
        // Predicated region
        $region13: #{tpu_custom_call.1} parent=11 // pred_check
          %p137 = pneg %p75
        $region14: #{tpu_custom_call.1} parent=11 // pred_check_branch
          %139 = sbr.rel (%p137) target = $region16
        $region15: #{tpu_custom_call.1} parent=11 // pred_region
          %s141 = ssub.s32 1024, 1024
          %142 = vsyncadd [#allocation7], %s141
          %s143 = sshll.u32 [#allocation6], 4
          %s144 = int_to_ptr.vmem [resolvable:$true] %s143
          %149 = dma.hbm_to_vmem [thread:$0]  %s1, 1024, %s144, [#allocation7], 128, 128, 8
        $region16: #{tpu_custom_call.1} parent=11 // pred_fallthru
          _
        // Predicated region
        $region17: #{tpu_custom_call.1} parent=11 // pred_check
          %p150 = pneg %p96
        $region18: #{tpu_custom_call.1} parent=11 // pred_check_branch
          %152 = sbr.rel (%p150) target = $region20
        $region19: #{tpu_custom_call.1} parent=11 // pred_region
          _
        $region20: #{tpu_custom_call.1} parent=11 // pred_fallthru
          _
      $region12: #{tpu_custom_call.1} parent=5 // pred_fallthru
        _
      %p153 = scmp.lt.s32.totalorder %s14, 4
      // Predicated region
      $region21: #{tpu_custom_call.1} parent=5 // pred_check
        %p154 = pneg %p153
      $region22: #{tpu_custom_call.1} parent=5 // pred_check_branch
        %156 = sbr.rel (%p154) target = $region24
      $region23: #{tpu_custom_call.1} parent=5 // pred_region
        // Predicated region
        $region25: #{tpu_custom_call.1} parent=23 // pred_check
          %p157 = pneg %p48
        $region26: #{tpu_custom_call.1} parent=23 // pred_check_branch
          %159 = sbr.rel (%p157) target = $region28
        $region27: #{tpu_custom_call.1} parent=23 // pred_region
          #allocation10 [shape = 'u32[6]{0}', space=smem, size = 0x18, scoped, tag = 'DMA stride descriptor']
          %s160 = sand.u32 %s38, 1
          %s161 = scalar_lea.sflag [#allocation4], %s160
          %s162 = sand.u32 %s38, 1
          %s163 = smul.addr %s162, 128
          %s164 = scalar_lea.vmem [#allocation3], %s163
          %s165 = smul.u32 8, %s21
          %s166 = smul.u32 2, %s22
          %s168 = ssub.s32 2048, 2048
          %169 = vsyncadd %s161, %s168
          %s170 = smul.addr %s165, 8
          %s171 = sadd.s32 %s166, %s170
          %s172 = smul.addr %s171, 128
          %s173 = scalar_lea.hbm %s0, %s172
          %s175 = sshll.u32 1, 14
          %s176 = sxor.u32 4294967295, %s175
          %s178 = sld [smem:[#allocation0]]
          %s179 = sadd.s32 2, %s178
          %s181 = sshll.u32 7, 26
          %s182 = sxor.u32 4294967295, %s181
          %s183 = sand.u32 0, %s182
          %s184 = sshll.u32 %s179, 26
          %s185 = sor.u32 %s183, %s184
          %s186 = sshll.u32 %s164, 4
          %s187 = int_to_ptr.vmem [resolvable:$true] %s186
          %193 = sst [smem:[#allocation10]] 1024
          %s194 = scalar_lea.smem [#allocation10], 1
          %195 = sst [smem:[%s194]] 256
          %s196 = scalar_lea.smem [#allocation10], 2
          %197 = sst [smem:[%s196]] 2
          %s198 = scalar_lea.smem [#allocation10], 3
          %199 = sst [smem:[%s198]] 128
          %s200 = scalar_lea.smem [#allocation10], 4
          %201 = sst [smem:[%s200]] 128
          %s202 = scalar_lea.smem [#allocation10], 5
          %203 = sst [smem:[%s202]] 8
          %205 = dma.general %s173, 2048, %s187, %s161, [#allocation9], [#allocation10], %s185, 0
        $region28: #{tpu_custom_call.1} parent=23 // pred_fallthru
          _
      $region24: #{tpu_custom_call.1} parent=5 // pred_fallthru
        _
      %p206 = scmp.le.s32.totalorder 1, %s14
      %p207 = scmp.lt.s32.totalorder %s14, 5
      %p208 = pnand %p206, %p207
      %p209 = pneg %p208
      // Predicated region
      $region29: #{tpu_custom_call.1} parent=5 // pred_check
        _
      $region30: #{tpu_custom_call.1} parent=5 // pred_check_branch
        %211 = sbr.rel (%p208) target = $region32
      $region31: #{tpu_custom_call.1} parent=5 // pred_region
        %s212 = ssub.s32 %s14, 1
        %s213 = sand.u32 %s41, 1
        %s214 = scalar_lea.sflag [#allocation4], %s213
        %s215 = sand.u32 %s41, 1
        %s216 = smul.addr %s215, 128
        %s217 = scalar_lea.vmem [#allocation3], %s216
        // Predicated region
        $region33: #{tpu_custom_call.1} parent=31 // pred_check
          %p218 = pneg %p54
        $region34: #{tpu_custom_call.1} parent=31 // pred_check_branch
          %220 = sbr.rel (%p218) target = $region36
        $region35: #{tpu_custom_call.1} parent=31 // pred_region
          %221 = dma.done %s214, 2048
        $region36: #{tpu_custom_call.1} parent=31 // pred_fallthru
          _
        // Predicated region
        $region37: #{tpu_custom_call.1} parent=31 // pred_check
          %p222 = pneg %p75
        $region38: #{tpu_custom_call.1} parent=31 // pred_check_branch
          %224 = sbr.rel (%p222) target = $region40
        $region39: #{tpu_custom_call.1} parent=31 // pred_region
          %225 = dma.done [#allocation7], 1024
        $region40: #{tpu_custom_call.1} parent=31 // pred_fallthru
          _
        %s226 = sand.u32 %s41, 1
        %s227 = scalar_lea.sflag [#allocation4], %s226
        %s228 = sand.u32 %s41, 1
        %s229 = smul.addr %s228, 128
        %s230 = scalar_lea.vmem [#allocation3], %s229
        %p231 = pneg %p54
        %p232 = pneg %p51
        %p233 = pneg %p75
        %p234 = pneg %p72
        %p235 = pneg %p96
        %p236 = pneg %p93
        %p237 = pneg %p122
        %p238 = pneg %p119
        %s239 = smul.u32 8, %s23
        %s240 = smul.u32 2, %s24
        %p241 = scmp.eq.s32.totalorder %s24, 0
        // Predicated region
        $region41: #{tpu_custom_call.1} parent=31 // pred_check
          %p242 = pneg %p241
        $region42: #{tpu_custom_call.1} parent=31 // pred_check_branch
          %244 = sbr.rel (%p242) target = $region44
        $region43: #{tpu_custom_call.1} parent=31 // pred_region
          %vm245 = vcmask 523264
          %246 = vst.msk [vmem:[#allocation2] sm:$0xff] %vm245, 0.0
        $region44: #{tpu_custom_call.1} parent=31 // pred_fallthru
          _
        %v247 = vld [vmem:[#allocation2] sm:$0xff]
        %v248 = vld [vmem:[%s217] sm:$0xff]
        %v249 = vld [vmem:[%s217 + $0x8] sm:$0xff]
        %v250 = vld [vmem:[%s217 + $0x10] sm:$0xff]
        %v251 = vld [vmem:[%s217 + $0x18] sm:$0xff]
        %v252 = vld [vmem:[%s217 + $0x20] sm:$0xff]
        %v253 = vld [vmem:[%s217 + $0x28] sm:$0xff]
        %v254 = vld [vmem:[%s217 + $0x30] sm:$0xff]
        %v255 = vld [vmem:[%s217 + $0x38] sm:$0xff]
        %v256 = vld [vmem:[%s217 + $0x40] sm:$0xff]
        %v257 = vld [vmem:[%s217 + $0x48] sm:$0xff]
        %v258 = vld [vmem:[%s217 + $0x50] sm:$0xff]
        %v259 = vld [vmem:[%s217 + $0x58] sm:$0xff]
        %v260 = vld [vmem:[%s217 + $0x60] sm:$0xff]
        %v261 = vld [vmem:[%s217 + $0x68] sm:$0xff]
        %v262 = vld [vmem:[%s217 + $0x70] sm:$0xff]
        %v263 = vld [vmem:[%s217 + $0x78] sm:$0xff]
        %vm264 = vcmask 523264
        %v265 = vsel %vm264, %v248, 0.0
        %v266 = vsel %vm264, %v249, 0.0
        %v267 = vadd.f32 %v265, %v266
        %v268 = vrot.slane %v267, 4
        %v269 = vadd.f32 %v267, %v268
        %v270 = vrot.slane %v269, 2
        %v271 = vadd.f32 %v269, %v270
        %v272 = vrot.slane %v271, 1
        %v273 = vadd.f32 %v271, %v272
        %v274 = vsel %vm264, %v250, 0.0
        %v275 = vsel %vm264, %v251, 0.0
        %v276 = vadd.f32 %v274, %v275
        %v277 = vrot.slane %v276, 4
        %v278 = vadd.f32 %v276, %v277
        %v279 = vrot.slane %v278, 2
        %v280 = vadd.f32 %v278, %v279
        %v281 = vrot.slane %v280, 1
        %v282 = vadd.f32 %v280, %v281
        %v283 = vsel %vm264, %v252, 0.0
        %v284 = vsel %vm264, %v253, 0.0
        %v285 = vadd.f32 %v283, %v284
        %v286 = vrot.slane %v285, 4
        %v287 = vadd.f32 %v285, %v286
        %v288 = vrot.slane %v287, 2
        %v289 = vadd.f32 %v287, %v288
        %v290 = vrot.slane %v289, 1
        %v291 = vadd.f32 %v289, %v290
        %v292 = vsel %vm264, %v254, 0.0
        %v293 = vsel %vm264, %v255, 0.0
        %v294 = vadd.f32 %v292, %v293
        %v295 = vrot.slane %v294, 4
        %v296 = vadd.f32 %v294, %v295
        %v297 = vrot.slane %v296, 2
        %v298 = vadd.f32 %v296, %v297
        %v299 = vrot.slane %v298, 1
        %v300 = vadd.f32 %v298, %v299
        %v301 = vsel %vm264, %v256, 0.0
        %v302 = vsel %vm264, %v257, 0.0
        %v303 = vadd.f32 %v301, %v302
        %v304 = vrot.slane %v303, 4
        %v305 = vadd.f32 %v303, %v304
        %v306 = vrot.slane %v305, 2
        %v307 = vadd.f32 %v305, %v306
        %v308 = vrot.slane %v307, 1
        %v309 = vadd.f32 %v307, %v308
        %v310 = vsel %vm264, %v258, 0.0
        %v311 = vsel %vm264, %v259, 0.0
        %v312 = vadd.f32 %v310, %v311
        %v313 = vrot.slane %v312, 4
        %v314 = vadd.f32 %v312, %v313
        %v315 = vrot.slane %v314, 2
        %v316 = vadd.f32 %v314, %v315
        %v317 = vrot.slane %v316, 1
        %v318 = vadd.f32 %v316, %v317
        %v319 = vsel %vm264, %v260, 0.0
        %v320 = vsel %vm264, %v261, 0.0
        %v321 = vadd.f32 %v319, %v320
        %v322 = vrot.slane %v321, 4
        %v323 = vadd.f32 %v321, %v322
        %v324 = vrot.slane %v323, 2
        %v325 = vadd.f32 %v323, %v324
        %v326 = vrot.slane %v325, 1
        %v327 = vadd.f32 %v325, %v326
        %v328 = vsel %vm264, %v262, 0.0
        %v329 = vsel %vm264, %v263, 0.0
        %v330 = vadd.f32 %v328, %v329
        %v331 = vrot.slane %v330, 4
        %v332 = vadd.f32 %v330, %v331
        %v333 = vrot.slane %v332, 2
        %v334 = vadd.f32 %v332, %v333
        %v335 = vrot.slane %v334, 1
        %v336 = vadd.f32 %v334, %v335
        %vm345 = vcmask 1041409
        %v346 = vsel %vm345, %v282, %v273
        %vm347 = vcmask 1042434
        %v348 = vsel %vm347, %v291, %v346
        %vm349 = vcmask 1043459
        %v350 = vsel %vm349, %v300, %v348
        %vm351 = vcmask 1044484
        %v352 = vsel %vm351, %v309, %v350
        %vm353 = vcmask 1045509
        %v354 = vsel %vm353, %v318, %v352
        %vm355 = vcmask 1046534
        %v356 = vsel %vm355, %v327, %v354
        %vm357 = vcmask 1047559
        %v358 = vsel %vm357, %v336, %v356
        %v360 = vadd.f32 %v247, %v358
        %361 = vst.msk [vmem:[#allocation2] sm:$0xff] %vm264, %v360
        %p362 = scmp.eq.s32.totalorder %s24, 3
        // Predicated region
        $region45: #{tpu_custom_call.1} parent=31 // pred_check
          %p363 = pneg %p362
        $region46: #{tpu_custom_call.1} parent=31 // pred_check_branch
          %365 = sbr.rel (%p363) target = $region48
        $region47: #{tpu_custom_call.1} parent=31 // pred_region
          %v366 = vld [vmem:[#allocation2] sm:$0xff]
          %v367 = vld [vmem:[#allocation6] sm:$0xff]
          %v368 = vld [vmem:[#allocation6 + $0x8] sm:$0xff]
          %v369 = vld [vmem:[#allocation6 + $0x10] sm:$0xff]
          %v370 = vld [vmem:[#allocation6 + $0x18] sm:$0xff]
          %v371 = vld [vmem:[#allocation6 + $0x20] sm:$0xff]
          %v372 = vld [vmem:[#allocation6 + $0x28] sm:$0xff]
          %v373 = vld [vmem:[#allocation6 + $0x30] sm:$0xff]
          %v374 = vld [vmem:[#allocation6 + $0x38] sm:$0xff]
          %v375 = vld [vmem:[%s2] sm:$0x1]
          %v377 = vlaneseq
          %v378 = vshrl.u32 %v377, 7
          %v379 = vsub.s32 0, %v378
          %v380 = vrot.slane %v375, %v379
          %v383 = vsel %vm264, %v366, 0
          %385 = vmatprep.subr.mxu0 0.0
          %386 = vmatpush1.msra.mxu0 %v367
          %387 = vmatprep.subr.mxu0 0.0
          %388 = vmatpush1.msra.mxu0 %v368
          %389 = vmatprep.subr.mxu0 0.0
          %390 = vmatpush1.msra.mxu0 %v369
          %391 = vmatprep.subr.mxu0 0.0
          %392 = vmatpush1.msra.mxu0 %v370
          %393 = vmatprep.subr.mxu0 0.0
          %394 = vmatpush1.msra.mxu0 %v371
          %395 = vmatprep.subr.mxu0 0.0
          %396 = vmatpush1.msra.mxu0 %v372
          %397 = vmatprep.subr.mxu0 0.0
          %398 = vmatpush1.msra.mxu0 %v373
          %399 = vmatprep.subr.mxu0 0.0
          %400 = vmatpush1.msra.mxu0 %v374
          %401 = vmatprep.subr.mxu0 0.0
          %402 = vmatpush1.msra.mxu0 0.0
          %403 = vmatprep.subr.mxu0 0.0
          %404 = vmatpush1.msra.mxu0 0.0
          %405 = vmatprep.subr.mxu0 0.0
          %406 = vmatpush1.msra.mxu0 0.0
          %407 = vmatprep.subr.mxu0 0.0
          %408 = vmatpush1.msra.mxu0 0.0
          %409 = vmatprep.subr.mxu0 0.0
          %410 = vmatpush1.msra.mxu0 0.0
          %411 = vmatprep.subr.mxu0 0.0
          %412 = vmatpush1.msra.mxu0 0.0
          %413 = vmatprep.subr.mxu0 0.0
          %414 = vmatpush1.msra.mxu0 0.0
          %415 = vmatprep.subr.mxu0 0.0
          %416 = vmatpush1.msra.mxu0 0.0
          %417 = vmatprep.subr.mxu0 0.0
          %418 = vmatpush1.msra.mxu0 0.0
          %419 = vmatprep.subr.mxu0 0.0
          %420 = vmatpush1.msra.mxu0 0.0
          %421 = vmatprep.subr.mxu0 0.0
          %422 = vmatpush1.msra.mxu0 0.0
          %423 = vmatprep.subr.mxu0 0.0
          %424 = vmatpush1.msra.mxu0 0.0
          %425 = vmatprep.subr.mxu0 0.0
          %426 = vmatpush1.msra.mxu0 0.0
          %427 = vmatprep.subr.mxu0 0.0
          %428 = vmatpush1.msra.mxu0 0.0
          %429 = vmatprep.subr.mxu0 0.0
          %430 = vmatpush1.msra.mxu0 0.0
          %431 = vmatprep.subr.mxu0 0.0
          %432 = vmatpush1.msra.mxu0 0.0
          %433 = vmatprep.subr.mxu0 0.0
          %434 = vmatpush1.msra.mxu0 0.0
          %435 = vmatprep.subr.mxu0 0.0
          %436 = vmatpush1.msra.mxu0 0.0
          %437 = vmatprep.subr.mxu0 0.0
          %438 = vmatpush1.msra.mxu0 0.0
          %439 = vmatprep.subr.mxu0 0.0
          %440 = vmatpush1.msra.mxu0 0.0
          %441 = vmatprep.subr.mxu0 0.0
          %442 = vmatpush1.msra.mxu0 0.0
          %443 = vmatprep.subr.mxu0 0.0
          %444 = vmatpush1.msra.mxu0 0.0
          %445 = vmatprep.subr.mxu0 0.0
          %446 = vmatpush1.msra.mxu0 0.0
          %447 = vmatprep.subr.mxu0 0.0
          %448 = vmatpush1.msra.mxu0 0.0
          %449 = vmatprep.mubr.f32.mxu0 0.0
          %450 = vmatmul.mubr.f32.gmra.mrb[0].mxu0 %v383
          %v451 = vpop.f32.mrb[0].mxu0
          %v452 = vadd.f32 %v380, %v451
          %v453 = vpop.f32.mrb[0].mxu0
          %454 = vdwg.mxu0
          %455 = vst [vmem:[#allocation8] sm:$0xff] %v452
        $region48: #{tpu_custom_call.1} parent=31 // pred_fallthru
          _
        // Predicated region
        $region49: #{tpu_custom_call.1} parent=31 // pred_check
          %p456 = pneg %p119
        $region50: #{tpu_custom_call.1} parent=31 // pred_check_branch
          %458 = sbr.rel (%p456) target = $region52
        $region51: #{tpu_custom_call.1} parent=31 // pred_region
          %s460 = ssub.s32 128, 128
          %461 = vsyncadd [#allocation5], %s460
          %s462 = smul.addr %s23, 128
          %s463 = scalar_lea.hbm %s3, %s462
          %s465 = sshll.u32 [#allocation8], 4
          %s466 = int_to_ptr.vmem [resolvable:$true] %s465
          %468 = dma.vmem_to_hbm [thread:$0]  %s466, 128, %s463, [#allocation5]
        $region52: #{tpu_custom_call.1} parent=31 // pred_fallthru
          _
        // Predicated region
        $region53: #{tpu_custom_call.1} parent=31 // pred_check
          %p469 = pneg %p119
        $region54: #{tpu_custom_call.1} parent=31 // pred_check_branch
          %471 = sbr.rel (%p469) target = $region56
        $region55: #{tpu_custom_call.1} parent=31 // pred_region
          %472 = dma.done [#allocation5], 128
        $region56: #{tpu_custom_call.1} parent=31 // pred_fallthru
          _
      $region32: #{tpu_custom_call.1} parent=5 // pred_fallthru
        _
      %p473 = scmp.le.s32.totalorder 2, %s14
      // Predicated region
      $region57: #{tpu_custom_call.1} parent=5 // pred_check
        %p474 = pneg %p473
      $region58: #{tpu_custom_call.1} parent=5 // pred_check_branch
        %476 = sbr.rel (%p474) target = $region60
      $region59: #{tpu_custom_call.1} parent=5 // pred_region
        %s477 = ssub.s32 %s14, 2
      $region60: #{tpu_custom_call.1} parent=5 // pred_fallthru
        _
    $region6: #{tpu_custom_call.1} parent=1 // loop_footer
      %s18 = sadd.s32 1, %s14
    $region7: #{tpu_custom_call.1} parent=1 // loop_footer_branch
      %13 = sbr.rel target = $region3
    $region8: #{tpu_custom_call.1} parent=1 // loop_exit
      _
    %478 = vsyncpa [#allocation4], 1
    %s479 = scalar_lea.sflag [#allocation4], 1
    %480 = vsyncpa %s479, 1
    %481 = vsyncpa [#allocation7], 1
    %482 = vsyncpa [#allocation5], 1
    %s483 = scalar_lea.sflag [#allocation5], 1
    %484 = vsyncpa %s483, 1

</llo_original>
